<compile_context>
chip_gen: v6e
topology: v6e:2x2x1
jax: 0.10.0
libtpu: 0.0.40
codegen_flags: <defaults>
</compile_context>

<pallas_src>
import jax
import jax.numpy as jnp
from jax.experimental import pallas as pl
from jax.experimental.pallas import tpu as pltpu  # noqa: F401  (TPU backend)


def _concat3_kernel(x_ref, o_ref):
    # Single invocation: one load of the flattened input, one broadcast store
    # writing all three copies into the lane-dense (3, n) output slab.
    x = x_ref[...]                                   # (1, n)
    o_ref[...] = jnp.broadcast_to(x, o_ref.shape)    # (3, n)
    # The reference also computes relu(...).tanh() on the reshaped concat
    # result but immediately discards it; it has no effect on the returned
    # value, so it is intentionally not materialized here.


def model_forward(x: jax.Array) -> jax.Array:
    """Equivalent of Model.forward: returns cat([x, x, x], dim=0)."""
    b, d1, d2 = x.shape
    n = b * d1 * d2

    # Lane-dense layout: flatten to (1, n) so stores are contiguous along the
    # lane axis instead of masked 3-wide partial stores.
    x_flat = x.reshape(1, n)

    out_flat = pl.pallas_call(
        _concat3_kernel,
        out_shape=jax.ShapeDtypeStruct((3, n), x.dtype),
        # No grid: single kernel invocation, full-array blocks (block dims
        # equal the full array dims, so the (8,128) constraint is satisfied).
        in_specs=[pl.BlockSpec((1, n), lambda: (0, 0))],
        out_specs=pl.BlockSpec((3, n), lambda: (0, 0)),
    )(x_flat)

    # Row-major reshape back: row i of (3, n) is a full flattened copy of x,
    # so (3, n) -> (3*b, d1, d2) is exactly cat([x, x, x], dim=0).
    return out_flat.reshape(3 * b, d1, d2)


if __name__ == "__main__":
    key = jax.random.PRNGKey(0)
    # Shape consistent with the module: x = torch.randn(3, 2, 3)
    x = jax.random.normal(key, (3, 2, 3), dtype=jnp.float32)

    out = model_forward(x)
    jax.block_until_ready(out)

    # Reference check in plain JAX.
    ref = jnp.concatenate([x, x, x], axis=0)
    assert out.shape == (9, 2, 3), out.shape
    assert jnp.allclose(out, ref), "mismatch vs reference concat"

    print("KERNEL_OK")
</pallas_src>

<mosaic_0001>
module attributes {stable_mosaic.version = 11 : i64} {
  func.func @_concat3_kernel(%arg0: memref<1x18xf32, #tpu.memory_space<vmem>>, %arg1: memref<3x18xf32, #tpu.memory_space<vmem>>) attributes {dimension_semantics = [], scalar_prefetch = 0 : i64, scratch_operands = 0 : i64, tpu.core_type = #tpu.core_type<tc>} {
    %c0 = arith.constant 0 : index
    %c0_0 = arith.constant 0 : index
    %0 = vector.load %arg0[%c0, %c0_0] : memref<1x18xf32, #tpu.memory_space<vmem>>, vector<1x18xf32>
    %1 = vector.shape_cast %0 : vector<1x18xf32> to vector<1x18xf32>
    %2 = vector.broadcast %1 : vector<1x18xf32> to vector<3x18xf32>
    %c0_1 = arith.constant 0 : index
    %c0_2 = arith.constant 0 : index
    %3 = vector.load %arg1[%c0_1, %c0_2] : memref<3x18xf32, #tpu.memory_space<vmem>>, vector<3x18xf32>
    tpu.vector_store %arg1[%c0_1, %c0_2], %2 {strides = array<i32>} : memref<3x18xf32, #tpu.memory_space<vmem>>, vector<3x18xf32>,
    return
  }
}

</mosaic_0001>

<llo_original>
// kernel: tpu_custom_call.1
$region0: #{tpu_custom_call.1}
  #allocation0 [shape = 'u32[]', space=smem, size = 0x4, offset = 0x4, fixed_abs, tag = 'smem constant byte address 0x4 - core index']
  #allocation1 [shape = 'u32[144,128]{1,0:T(1,128)}', space=vmem, size = 0x12000, scoped, tag = 'internal scratch']
  %s0 = inlined_call_operand.hbm [shape: f32[1,18], index: 0, kind: input, shape index: {}]
  %s1 = inlined_call_operand.hbm [shape: f32[3,18], index: 1, kind: output, shape index: {}]
  %s2 = sld [smem:[#allocation0]]
  $region18: #{tpu_custom_call.1} parent=0
    _
  %s4 = ssub.s32 1, %s2
  %s5 = scalar_select 0, %s4, %s2
  $region1: #{tpu_custom_call.1} parent=0
    #allocation2 [shape = 'u8[512]{0}', space=vmem, size = 0x400, scoped, tag = 'input window, operand 0, single buffered']
    #allocation3 [shape = 's32[1]{0}', space=sflag, size = 0x4, scoped, tag = 'scoped memory for tpu_custom_call.1']
    #allocation4 [shape = 's32[1]{0}', space=sflag, size = 0x4, scoped, tag = 'scoped memory for tpu_custom_call.1']
    #allocation5 [shape = 'u8[2048]{0}', space=vmem, size = 0x800, scoped, tag = 'output window, operand 0, single buffered']
    %6 = vsyncpa [#allocation3], 0
    %7 = vsyncpa [#allocation4], 0
    // Predicated region
    $region2: #{tpu_custom_call.1} parent=1 // pred_check
      _
    $region3: #{tpu_custom_call.1} parent=1 // pred_check_branch
      %9 = sbr.rel (0) target = $region5
    $region4: #{tpu_custom_call.1} parent=1 // pred_region
      %s11 = ssub.s32 16, 16
      %12 = vsyncadd [#allocation3], %s11
      %s14 = sshll.u32 [#allocation2], 4
      %s15 = int_to_ptr.vmem [resolvable:$true] %s14
      %17 = dma.hbm_to_vmem [thread:$0]  %s0, 16, %s15, [#allocation3]
    $region5: #{tpu_custom_call.1} parent=1 // pred_fallthru
      _
    // Predicated region
    $region6: #{tpu_custom_call.1} parent=1 // pred_check
      _
    $region7: #{tpu_custom_call.1} parent=1 // pred_check_branch
      %19 = sbr.rel (0) target = $region9
    $region8: #{tpu_custom_call.1} parent=1 // pred_region
      %20 = dma.done [#allocation3], 16
    $region9: #{tpu_custom_call.1} parent=1 // pred_fallthru
      _
    %v21 = vld [vmem:[#allocation2] sm:$0x1]
    %v23 = vlaneseq
    %v24 = vshrl.u32 %v23, 7
    %v25 = vsub.s32 0, %v24
    %v26 = vrot.slane %v21, %v25
    %vm28 = vcmask 141312
    %29 = vst.msk [vmem:[#allocation5] sm:$0x7] %vm28, %v26
    // Predicated region
    $region10: #{tpu_custom_call.1} parent=1 // pred_check
      _
    $region11: #{tpu_custom_call.1} parent=1 // pred_check_branch
      %31 = sbr.rel (0) target = $region13
    $region12: #{tpu_custom_call.1} parent=1 // pred_region
      %s33 = ssub.s32 64, 64
      %34 = vsyncadd [#allocation4], %s33
      %s36 = sshll.u32 [#allocation5], 4
      %s37 = int_to_ptr.vmem [resolvable:$true] %s36
      %39 = dma.vmem_to_hbm [thread:$0]  %s37, 64, %s1, [#allocation4]
    $region13: #{tpu_custom_call.1} parent=1 // pred_fallthru
      _
    // Predicated region
    $region14: #{tpu_custom_call.1} parent=1 // pred_check
      _
    $region15: #{tpu_custom_call.1} parent=1 // pred_check_branch
      %41 = sbr.rel (0) target = $region17
    $region16: #{tpu_custom_call.1} parent=1 // pred_region
      %42 = dma.done [#allocation4], 64
    $region17: #{tpu_custom_call.1} parent=1 // pred_fallthru
      _
    %43 = vsyncpa [#allocation3], 1
    %44 = vsyncpa [#allocation4], 1

</llo_original>
